<compile_context>
chip_gen: v7x
topology: tpu7x:2x2x1
jax: 0.10.0
libtpu: 0.0.40
codegen_flags: <defaults>
</compile_context>

<pallas_src>
import jax
import jax.numpy as jnp
from jax.experimental import pallas as pl
from jax.experimental.pallas import tpu as pltpu

_LANE = 128


# ----------------------------- kernel bodies --------------------------------
def _make_entropy_kernel(keep_channel_dim):
    def kernel(logit_ref, out_ref):
        xl = logit_ref[...]                                   # native dtype block
        # channel max in native dtype (exact), single f32 upcast afterwards
        m = jnp.max(xl, axis=1, keepdims=True).astype(jnp.float32)
        z = xl.astype(jnp.float32) - m
        e = jnp.exp(z)
        s = jnp.sum(e, axis=1, keepdims=keep_channel_dim)
        t = jnp.sum(e * z, axis=1, keepdims=keep_channel_dim)
        # entropy = log(s) - sum(e*z)/s  ==  -(p * log_p).sum over channels
        out_ref[...] = (jnp.log(s) - t / s).astype(out_ref.dtype)
    return kernel


# ----------------------------- sizing helpers --------------------------------
def _itemsize(dtype):
    return jnp.dtype(dtype).itemsize


def _sublane(dtype):
    return {4: 8, 2: 16, 1: 32}.get(_itemsize(dtype), 8)


def _round_up(x, m):
    return ((x + m - 1) // m) * m


def _vmem_limit_bytes():
    try:
        cap = int(getattr(pltpu.get_tpu_info(), "vmem_capacity_bytes", 64 << 20))
    except Exception:
        cap = 64 << 20                      # conservative (v7x-sized) fallback
    # v5e/v6e (128 MiB) -> 64 MiB scoped limit; v7x (64 MiB) -> 32 MiB.
    return min(cap // 2, 64 << 20)


def _block3_bytes(b_t, C, t_hw, in_dtype, out_dtype):
    """Working-set estimate for a (b_t, C, t_hw) block (channel on sublanes)."""
    in_b = b_t * _round_up(C, _sublane(in_dtype)) * t_hw * _itemsize(in_dtype)
    out_b = b_t * _round_up(1, _sublane(out_dtype)) * t_hw * _itemsize(out_dtype)
    tmp = 3 * b_t * _round_up(C, 8) * t_hw * 4          # f32 temporaries
    return 2 * in_b + 2 * out_b + tmp                   # double-buffered I/O


def _block4_bytes(b_t, C, r_t, in_dtype, out_dtype):
    """Working-set estimate for a (b_t, C, r_t, 128) block (channel vreg-major)."""
    in_b = b_t * C * _round_up(r_t, _sublane(in_dtype)) * _LANE * _itemsize(in_dtype)
    out_b = b_t * _round_up(r_t, _sublane(out_dtype)) * _LANE * _itemsize(out_dtype)
    tmp = 3 * b_t * C * _round_up(r_t, 8) * _LANE * 4
    return 2 * in_b + 2 * out_b + tmp


def _fold_batch(B, g_spatial, per_batch_bytes, budget):
    """Fold batch rows into one block only while the grid keeps enough
    parallel steps (pipeline + both v7x TensorCores) and blocks stay small."""
    fold_cap = min(budget, 6 << 20)
    natural = B * g_spatial
    best = 1
    for d in range(1, B + 1):
        if B % d:
            continue
        if d > 1 and d * per_batch_bytes > fold_cap:
            continue
        steps = (B // d) * g_spatial
        if steps < min(natural, 8):
            continue
        best = d
    return best


# ------------------------------- wrapper -------------------------------------
def entropy(logit, label=None, out_dtype=None):
    """Pallas implementation of the Entropy module forward (label unused).

    out_dtype defaults to float32; pass e.g. jnp.bfloat16 to halve writeback
    bytes when reduced output precision is acceptable.
    """
    del label
    out_dtype = jnp.float32 if out_dtype is None else out_dtype
    B, C, H, W = logit.shape
    HW = H * W
    in_dtype = logit.dtype

    vmem_limit = _vmem_limit_bytes()
    budget = (vmem_limit * 3) // 4
    cparams = pltpu.CompilerParams(
        dimension_semantics=("parallel", "parallel"),
        vmem_limit_bytes=int(vmem_limit),
    )

    if HW % _LANE == 0:
        # ---- channel-vreg-major layout: (B, C, rows, 128) ----
        rows = HW // _LANE
        x = logit.reshape(B, C, rows, _LANE)          # contiguous, free reshape
        sub = _sublane(in_dtype)
        r_t = 1
        for r in sorted({2 * sub, sub, 8, 4, 2, 1}, reverse=True):
            cand = min(r, rows)
            if _block4_bytes(1, C, cand, in_dtype, out_dtype) <= budget:
                r_t = cand
                break
        g_s = pl.cdiv(rows, r_t)
        b_t = _fold_batch(B, g_s, _block4_bytes(1, C, r_t, in_dtype, out_dtype),
                          budget)
        grid = (B // b_t, g_s)

        out = pl.pallas_call(
            _make_entropy_kernel(keep_channel_dim=False),
            out_shape=jax.ShapeDtypeStruct((B, rows, _LANE), out_dtype),
            grid_spec=pltpu.PrefetchScalarGridSpec(
                num_scalar_prefetch=0,
                grid=grid,
                in_specs=[pl.BlockSpec((b_t, C, r_t, _LANE),
                                       lambda b, s: (b, 0, s, 0))],
                out_specs=pl.BlockSpec((b_t, r_t, _LANE),
                                       lambda b, s: (b, s, 0)),
            ),
            compiler_params=cparams,
        )(x)
        return out.reshape(B, H, W)

    # ---- fallback: (B, C, HW) with channel on sublanes, ragged lane tile ----
    x = logit.reshape(B, C, HW)
    hw_cap = _round_up(HW, _LANE)
    t_hw = _LANE
    for lanes in (2048, 1024, 512, 256, 128):
        cand = min(lanes, hw_cap)
        if _block3_bytes(1, C, cand, in_dtype, out_dtype) <= budget:
            t_hw = cand
            break
    g_s = pl.cdiv(HW, t_hw)
    b_t = _fold_batch(B, g_s, _block3_bytes(1, C, t_hw, in_dtype, out_dtype),
                      budget)
    grid = (B // b_t, g_s)

    out = pl.pallas_call(
        _make_entropy_kernel(keep_channel_dim=True),
        out_shape=jax.ShapeDtypeStruct((B, 1, HW), out_dtype),
        grid_spec=pltpu.PrefetchScalarGridSpec(
            num_scalar_prefetch=0,
            grid=grid,
            in_specs=[pl.BlockSpec((b_t, C, t_hw), lambda b, s: (b, 0, s))],
            out_specs=pl.BlockSpec((b_t, 1, t_hw), lambda b, s: (b, 0, s)),
        ),
        compiler_params=cparams,
    )(x)
    return out.reshape(B, H, W)


# ------------------------------ reference ------------------------------------
def _entropy_ref(logit):
    p = jax.nn.softmax(logit.astype(jnp.float32), axis=1)
    logp = jax.nn.log_softmax(logit.astype(jnp.float32), axis=1)
    return -(p * logp).sum(axis=1)


if __name__ == "__main__":
    key = jax.random.PRNGKey(0)
    k1, k2 = jax.random.split(key)

    B, C, H, W = 2, 4, 16, 16
    logit = jax.random.normal(k1, (B, C, H, W), dtype=jnp.float32)
    label = jax.random.randint(k2, (B, H, W), 0, C)     # unused, API parity

    out = jax.block_until_ready(entropy(logit, label))
    ref = _entropy_ref(logit)
    assert out.shape == (B, H, W), out.shape
    assert jnp.allclose(out, ref, atol=1e-5, rtol=1e-5), "f32 mismatch vs reference"

    # bf16 input + non-128-aligned spatial size -> exercises the ragged
    # (B, C, HW) fallback path with no wrapper-side padding.
    logit_bf16 = jax.random.normal(k2, (2, 4, 10, 10), dtype=jnp.bfloat16)
    out2 = jax.block_until_ready(entropy(logit_bf16))
    ref2 = _entropy_ref(logit_bf16)
    assert out2.shape == (2, 10, 10), out2.shape
    assert jnp.allclose(out2, ref2, atol=2e-3, rtol=2e-3), "bf16 mismatch"

    print("KERNEL_OK")
</pallas_src>

<mosaic_0001>
module attributes {stable_mosaic.version = 11 : i64} {
  func.func @kernel(%arg0: i32, %arg1: i32, %arg2: memref<1x4x2x128xf32, #tpu.memory_space<vmem>>, %arg3: memref<1x2x128xf32, #tpu.memory_space<vmem>>) attributes {dimension_semantics = [#tpu.dimension_semantics<parallel>, #tpu.dimension_semantics<parallel>], iteration_bounds = array<i64: 2, 1>, scalar_prefetch = 0 : i64, scratch_operands = 0 : i64, tpu.core_type = #tpu.core_type<tc>, window_params = [{transform_indices = @transform_0, window_bounds = array<i64: 1, 4, 2, 128>}, {transform_indices = @transform_1, window_bounds = array<i64: 1, 2, 128>}]} {
    %c0 = arith.constant 0 : index
    %c0_0 = arith.constant 0 : index
    %c0_1 = arith.constant 0 : index
    %c0_2 = arith.constant 0 : index
    %0 = vector.load %arg2[%c0, %c0_0, %c0_1, %c0_2] : memref<1x4x2x128xf32, #tpu.memory_space<vmem>>, vector<1x4x2x128xf32>
    %cst = arith.constant dense<0xFF800000> : vector<1x2x128xf32>
    %1 = vector.multi_reduction <maximumf>, %0, %cst [1] : vector<1x4x2x128xf32> to vector<1x2x128xf32>
    %2 = vector.shape_cast %1 : vector<1x2x128xf32> to vector<1x1x2x128xf32>
    %3 = vector.broadcast %2 : vector<1x1x2x128xf32> to vector<1x4x2x128xf32>
    %4 = arith.subf %0, %3 : vector<1x4x2x128xf32>
    %5 = math.exp %4 : vector<1x4x2x128xf32>
    %cst_3 = arith.constant dense<0.000000e+00> : vector<1x2x128xf32>
    %6 = vector.multi_reduction <add>, %5, %cst_3 [1] : vector<1x4x2x128xf32> to vector<1x2x128xf32>
    %7 = arith.mulf %5, %4 : vector<1x4x2x128xf32>
    %cst_4 = arith.constant dense<0.000000e+00> : vector<1x2x128xf32>
    %8 = vector.multi_reduction <add>, %7, %cst_4 [1] : vector<1x4x2x128xf32> to vector<1x2x128xf32>
    %9 = math.log %6 : vector<1x2x128xf32>
    %10 = arith.divf %8, %6 : vector<1x2x128xf32>
    %11 = arith.subf %9, %10 : vector<1x2x128xf32>
    %c0_5 = arith.constant 0 : index
    %c0_6 = arith.constant 0 : index
    %c0_7 = arith.constant 0 : index
    %12 = vector.load %arg3[%c0_5, %c0_6, %c0_7] : memref<1x2x128xf32, #tpu.memory_space<vmem>>, vector<1x2x128xf32>
    tpu.vector_store %arg3[%c0_5, %c0_6, %c0_7], %11 {strides = array<i32>} : memref<1x2x128xf32, #tpu.memory_space<vmem>>, vector<1x2x128xf32>,
    return
  }
  func.func @transform_0(%arg0: i32, %arg1: i32) -> (i32, i32, i32, i32) {
    %c0_i32 = arith.constant 0 : i32
    %c0_i32_0 = arith.constant 0 : i32
    %c0_i32_1 = arith.constant 0 : i32
    return %arg0, %c0_i32, %arg1, %c0_i32_0 : i32, i32, i32, i32
  }
  func.func @transform_1(%arg0: i32, %arg1: i32) -> (i32, i32, i32) {
    %c0_i32 = arith.constant 0 : i32
    %c0_i32_0 = arith.constant 0 : i32
    return %arg0, %arg1, %c0_i32 : i32, i32, i32
  }
}

</mosaic_0001>

<llo_original>
// kernel: tpu_custom_call.1
$region0: #{tpu_custom_call.1}
  #allocation0 [shape = 'u32[]', space=smem, size = 0x4, offset = 0x4, fixed_abs, tag = 'smem constant byte address 0x4 - core index']
  #allocation1 [shape = 'u32[144,128]{1,0:T(1,128)}', space=vmem, size = 0x12000, scoped, tag = 'internal scratch']
  %s0 = inlined_call_operand.hbm [shape: f32[2,4,2,128], index: 0, kind: input, shape index: {}]
  %s1 = inlined_call_operand.hbm [shape: f32[2,2,128], index: 1, kind: output, shape index: {}]
  %s2 = sld [smem:[#allocation0]]
  $region41: #{tpu_custom_call.1} parent=0
    _
  %s4 = ssub.s32 1, %s2
  %s5 = scalar_select 0, %s4, %s2
  $region1: #{tpu_custom_call.1} parent=0
    #allocation2 [shape = 'u8[8192]{0}', space=vmem, size = 0x2000, scoped, tag = 'input window, operand 0']
    #allocation3 [shape = 's32[2]{0}', space=sflag, size = 0x8, scoped, tag = 'scoped memory for tpu_custom_call.1']
    #allocation4 [shape = 's32[2]{0}', space=sflag, size = 0x8, scoped, tag = 'scoped memory for tpu_custom_call.1']
    #allocation5 [shape = 'u8[2048]{0}', space=vmem, size = 0x800, scoped, tag = 'output window, operand 0']
    %6 = vsyncpa [#allocation3], 0
    %s7 = scalar_lea.sflag [#allocation3], 1
    %8 = vsyncpa %s7, 0
    %9 = vsyncpa [#allocation4], 0
    %s10 = scalar_lea.sflag [#allocation4], 1
    %11 = vsyncpa %s10, 0
    loop: start=0, step=1, limit=4
    $region2: #{tpu_custom_call.1} parent=1 // loop_pre_header
      _
    $region3: #{tpu_custom_call.1} parent=1 // loop_header
      %s13 = sphi 0, %s17
      %p14 = scmp.ge.s32.totalorder %s13, 4
      %s20 = sphi 0, %s32
      %s21 = sphi 0, %s28
      %s22 = sphi 0, %s20
      %s23 = sphi 0, %s21
      %s24 = sphi 0, %s22
      %s25 = sphi 0, %s23
      %s37 = sphi 0, %s39
      %s40 = sphi 0, %s37
      %s41 = sphi 0, %s40
      %s57 = sphi 0, %s41
      %s65 = sphi 0, %s67
      %s68 = sphi 0, %s65
      %s69 = sphi 0, %s68
      %s85 = sphi 0, %s69
    $region4: #{tpu_custom_call.1} parent=1 // loop_header_branch
      %16 = sbr.rel (%p14) target = $region8
    $region5: #{tpu_custom_call.1} parent=1 // loop_body
      %s18 = ssub.s32 %s13, 1
      %s19 = ssub.s32 %s13, 2
      %s26 = sadd.s32 1, %s21
      %p27 = scmp.ge.s32.totalorder %s26, 1
      %s28 = scalar_select %p27, 0, %s26
      %s29 = sadd.s32 1, %s20
      %s30 = scalar_select %p27, %s29, %s20
      %p31 = scmp.ge.s32.totalorder %s30, 2
      %s32 = scalar_select %p31, 0, %s30
      %s33 = ssub.s32 %s20, %s32
      %s34 = ssub.s32 %s21, %s28
      %s35 = sor.u32 %s33, %s34
      %p36 = scmp.eq.s32.totalorder %s35, 0
      %s38 = sadd.s32 %s37, 1
      %s39 = scalar_select %p36, %s37, %s38
      %p42 = pneg %p36
      %p43 = scmp.eq.s32.totalorder %s13, 1
      %p44 = por %p42, %p43
      %p45 = scmp.ne.s32.totalorder %s37, %s40
      %p46 = scmp.eq.s32.totalorder %s13, 0
      %p47 = por %p45, %p46
      %p48 = scmp.ne.s32.totalorder %s37, %s40
      %p49 = scmp.eq.s32.totalorder %s18, 1
      %p50 = por %p48, %p49
      %p51 = scmp.ne.s32.totalorder %s40, %s41
      %p52 = scmp.eq.s32.totalorder %s18, 0
      %p53 = por %p51, %p52
      %p54 = scmp.ne.s32.totalorder %s40, %s41
      %p55 = scmp.eq.s32.totalorder %s19, 1
      %p56 = por %p54, %p55
      %p58 = scmp.ne.s32.totalorder %s41, %s57
      %p59 = scmp.eq.s32.totalorder %s19, 0
      %p60 = por %p58, %p59
      %s61 = ssub.s32 %s20, %s32
      %s62 = ssub.s32 %s21, %s28
      %s63 = sor.u32 %s61, %s62
      %p64 = scmp.eq.s32.totalorder %s63, 0
      %s66 = sadd.s32 %s65, 1
      %s67 = scalar_select %p64, %s65, %s66
      %p70 = pneg %p64
      %p71 = scmp.eq.s32.totalorder %s13, 1
      %p72 = por %p70, %p71
      %p73 = scmp.ne.s32.totalorder %s65, %s68
      %p74 = scmp.eq.s32.totalorder %s13, 0
      %p75 = por %p73, %p74
      %p76 = scmp.ne.s32.totalorder %s65, %s68
      %p77 = scmp.eq.s32.totalorder %s18, 1
      %p78 = por %p76, %p77
      %p79 = scmp.ne.s32.totalorder %s68, %s69
      %p80 = scmp.eq.s32.totalorder %s18, 0
      %p81 = por %p79, %p80
      %p82 = scmp.ne.s32.totalorder %s68, %s69
      %p83 = scmp.eq.s32.totalorder %s19, 1
      %p84 = por %p82, %p83
      %p86 = scmp.ne.s32.totalorder %s69, %s85
      %p87 = scmp.eq.s32.totalorder %s19, 0
      %p88 = por %p86, %p87
      %p89 = scmp.le.s32.totalorder 1, %s13
      %p90 = scmp.lt.s32.totalorder %s13, 3
      %p91 = pnand %p89, %p90
      %p92 = pneg %p91
      // Predicated region
      $region9: #{tpu_custom_call.1} parent=5 // pred_check
        _
      $region10: #{tpu_custom_call.1} parent=5 // pred_check_branch
        %94 = sbr.rel (%p91) target = $region12
      $region11: #{tpu_custom_call.1} parent=5 // pred_region
        %s95 = ssub.s32 %s13, 1
      $region12: #{tpu_custom_call.1} parent=5 // pred_fallthru
        _
      %p96 = scmp.lt.s32.totalorder %s13, 2
      // Predicated region
      $region13: #{tpu_custom_call.1} parent=5 // pred_check
        %p97 = pneg %p96
      $region14: #{tpu_custom_call.1} parent=5 // pred_check_branch
        %99 = sbr.rel (%p97) target = $region16
      $region15: #{tpu_custom_call.1} parent=5 // pred_region
        // Predicated region
        $region17: #{tpu_custom_call.1} parent=15 // pred_check
          %p100 = pneg %p47
        $region18: #{tpu_custom_call.1} parent=15 // pred_check_branch
          %102 = sbr.rel (%p100) target = $region20
        $region19: #{tpu_custom_call.1} parent=15 // pred_region
          %s103 = sand.u32 %s37, 1
          %s104 = scalar_lea.sflag [#allocation3], %s103
          %s105 = sand.u32 %s37, 1
          %s106 = smul.addr %s105, 8
          %s107 = scalar_lea.vmem [#allocation2], %s106
          %s109 = ssub.s32 128, 128
          %110 = vsyncadd %s104, %s109
          %s111 = smul.addr %s20, 4
          %s112 = sadd.s32 %s21, %s111
          %s113 = smul.addr %s112, 32
          %s114 = scalar_lea.hbm %s0, %s113
          %s115 = sshll.u32 %s107, 4
          %s116 = int_to_ptr.vmem [resolvable:$true] %s115
          %121 = dma.hbm_to_vmem [thread:$0]  %s114, 128, %s116, %s104, 32, 32, 2
        $region20: #{tpu_custom_call.1} parent=15 // pred_fallthru
          _
      $region16: #{tpu_custom_call.1} parent=5 // pred_fallthru
        _
      %p122 = scmp.le.s32.totalorder 1, %s13
      %p123 = scmp.lt.s32.totalorder %s13, 3
      %p124 = pnand %p122, %p123
      %p125 = pneg %p124
      // Predicated region
      $region21: #{tpu_custom_call.1} parent=5 // pred_check
        _
      $region22: #{tpu_custom_call.1} parent=5 // pred_check_branch
        %127 = sbr.rel (%p124) target = $region24
      $region23: #{tpu_custom_call.1} parent=5 // pred_region
        %s128 = ssub.s32 %s13, 1
        %s129 = sand.u32 %s40, 1
        %s130 = scalar_lea.sflag [#allocation3], %s129
        %s131 = sand.u32 %s40, 1
        %s132 = smul.addr %s131, 8
        %s133 = scalar_lea.vmem [#allocation2], %s132
        // Predicated region
        $region25: #{tpu_custom_call.1} parent=23 // pred_check
          %p134 = pneg %p53
        $region26: #{tpu_custom_call.1} parent=23 // pred_check_branch
          %136 = sbr.rel (%p134) target = $region28
        $region27: #{tpu_custom_call.1} parent=23 // pred_region
          %137 = dma.done %s130, 128
        $region28: #{tpu_custom_call.1} parent=23 // pred_fallthru
          _
        %s138 = sand.u32 %s40, 1
        %s139 = scalar_lea.sflag [#allocation3], %s138
        %s140 = sand.u32 %s40, 1
        %s141 = smul.addr %s140, 8
        %s142 = scalar_lea.vmem [#allocation2], %s141
        %p143 = pneg %p53
        %p144 = pneg %p50
        %p145 = pneg %p81
        %p146 = pneg %p78
        %s147 = sand.u32 %s68, 1
        %s148 = scalar_lea.sflag [#allocation4], %s147
        %s149 = sand.u32 %s68, 1
        %s150 = smul.addr %s149, 2
        %s151 = scalar_lea.vmem [#allocation5], %s150
        %v152 = vld [vmem:[%s133] sm:$0x3]
        %v153 = vld [vmem:[%s133 + $0x2] sm:$0x3]
        %v154 = vld [vmem:[%s133 + $0x4] sm:$0x3]
        %v155 = vld [vmem:[%s133 + $0x6] sm:$0x3]
        %vm156 = vcmask 1041408
        %v157 = vsel %vm156, %v152, -inf
        %v158 = vsel %vm156, %v153, -inf
        %v159 = vsel %vm156, %v154, -inf
        %v160 = vsel %vm156, %v155, -inf
        %v161 = vmax.f32 %v157, %v158
        %v162 = vmax.f32 %v159, %v160
        %v163 = vmax.f32 %v161, %v162
        %v164 = vsub.f32 %v152, %v163
        %v165 = vsub.f32 %v153, %v163
        %v166 = vsub.f32 %v154, %v163
        %v167 = vsub.f32 %v155, %v163
        %v168 = vmul.f32 %v164, 1.442695
        %v169 = vpow.pop %v168
        %v170 = vmul.f32 %v165, 1.442695
        %v171 = vpow.pop %v170
        %v172 = vmul.f32 %v166, 1.442695
        %v173 = vpow.pop %v172
        %v174 = vmul.f32 %v167, 1.442695
        %v175 = vpow.pop %v174
        %v176 = vsel %vm156, %v169, 0.0
        %v177 = vsel %vm156, %v171, 0.0
        %v178 = vadd.f32 %v176, %v177
        %v179 = vsel %vm156, %v173, 0.0
        %v180 = vadd.f32 %v178, %v179
        %v181 = vsel %vm156, %v175, 0.0
        %v182 = vadd.f32 %v180, %v181
        %v183 = vmul.f32 %v169, %v164
        %v184 = vmul.f32 %v171, %v165
        %v185 = vmul.f32 %v173, %v166
        %v186 = vmul.f32 %v175, %v167
        %v187 = vsel %vm156, %v183, 0.0
        %v188 = vsel %vm156, %v184, 0.0
        %v189 = vadd.f32 %v187, %v188
        %v190 = vsel %vm156, %v185, 0.0
        %v191 = vadd.f32 %v189, %v190
        %v192 = vsel %vm156, %v186, 0.0
        %v193 = vadd.f32 %v191, %v192
        %v194 = vlog2.pop %v182
        %v195 = vmul.f32 %v194, 0.6931472
        %v196 = vrcp.pop %v182
        %v197 = vmul.f32 %v193, %v196
        %v198 = vsub.f32 %v195, %v197
        %199 = vst [vmem:[%s151] sm:$0x3] %v198
        %s200 = sand.u32 %s68, 1
        %s201 = scalar_lea.sflag [#allocation4], %s200
        %s202 = sand.u32 %s68, 1
        %s203 = smul.addr %s202, 2
        %s204 = scalar_lea.vmem [#allocation5], %s203
        // Predicated region
        $region29: #{tpu_custom_call.1} parent=23 // pred_check
          %p205 = pneg %p78
        $region30: #{tpu_custom_call.1} parent=23 // pred_check_branch
          %207 = sbr.rel (%p205) target = $region32
        $region31: #{tpu_custom_call.1} parent=23 // pred_region
          %s209 = ssub.s32 32, 32
          %210 = vsyncadd %s201, %s209
          %s211 = sadd.s32 %s23, %s22
          %s212 = smul.addr %s211, 32
          %s213 = scalar_lea.hbm %s1, %s212
          %s215 = sshll.u32 %s204, 4
          %s216 = int_to_ptr.vmem [resolvable:$true] %s215
          %218 = dma.vmem_to_hbm [thread:$0]  %s216, 32, %s213, %s201
        $region32: #{tpu_custom_call.1} parent=23 // pred_fallthru
          _
      $region24: #{tpu_custom_call.1} parent=5 // pred_fallthru
        _
      %p219 = scmp.le.s32.totalorder 2, %s13
      // Predicated region
      $region33: #{tpu_custom_call.1} parent=5 // pred_check
        %p220 = pneg %p219
      $region34: #{tpu_custom_call.1} parent=5 // pred_check_branch
        %222 = sbr.rel (%p220) target = $region36
      $region35: #{tpu_custom_call.1} parent=5 // pred_region
        %s223 = ssub.s32 %s13, 2
        // Predicated region
        $region37: #{tpu_custom_call.1} parent=35 // pred_check
          %p224 = pneg %p84
        $region38: #{tpu_custom_call.1} parent=35 // pred_check_branch
          %226 = sbr.rel (%p224) target = $region40
        $region39: #{tpu_custom_call.1} parent=35 // pred_region
          %s227 = sand.u32 %s69, 1
          %s228 = scalar_lea.sflag [#allocation4], %s227
          %s229 = sand.u32 %s69, 1
          %s230 = smul.addr %s229, 2
          %s231 = scalar_lea.vmem [#allocation5], %s230
          %232 = dma.done %s228, 32
        $region40: #{tpu_custom_call.1} parent=35 // pred_fallthru
          _
      $region36: #{tpu_custom_call.1} parent=5 // pred_fallthru
        _
    $region6: #{tpu_custom_call.1} parent=1 // loop_footer
      %s17 = sadd.s32 1, %s13
    $region7: #{tpu_custom_call.1} parent=1 // loop_footer_branch
      %12 = sbr.rel target = $region3
    $region8: #{tpu_custom_call.1} parent=1 // loop_exit
      _
    %233 = vsyncpa [#allocation3], 1
    %s234 = scalar_lea.sflag [#allocation3], 1
    %235 = vsyncpa %s234, 1
    %236 = vsyncpa [#allocation4], 1
    %s237 = scalar_lea.sflag [#allocation4], 1
    %238 = vsyncpa %s237, 1

</llo_original>
